<compile_context>
chip_gen: v7x
topology: tpu7x:2x2x1
jax: 0.10.0
libtpu: 0.0.40
codegen_flags: <defaults>
</compile_context>

<pallas_src>
from typing import NamedTuple

import jax
import jax.numpy as jnp
from jax.experimental import pallas as pl
from jax.experimental.pallas import tpu as pltpu


# --------------------------------------------------------------------------- #
# Helpers
# --------------------------------------------------------------------------- #
def _round_up(x, m):
    return ((x + m - 1) // m) * m


def _tpu_vmem_capacity():
    """Per-core VMEM capacity in bytes (128 MiB on v5e/v6e, 64 MiB on v7x)."""
    try:
        cap = int(pltpu.get_tpu_info().vmem_capacity_bytes)
        if cap > 0:
            return cap
    except Exception:
        pass
    return 64 * 1024 * 1024  # conservative fallback (v7x-sized)


def _sublane(*dtypes):
    """Second-minor block granularity safe for every dtype involved."""
    return max(8, max(32 // jnp.dtype(d).itemsize for d in dtypes))


def _vmem_footprint(tb, th, d_in, compute_dtype, out_dtype, code_dtype,
                    acc_in_output):
    """Rough double-buffered VMEM footprint (bytes) of one grid step."""
    wb = jnp.dtype(compute_dtype).itemsize
    ob = jnp.dtype(out_dtype).itemsize
    cb = jnp.dtype(code_dtype).itemsize
    f = (2 * tb * d_in * wb        # x tile
         + 2 * d_in * th * wb      # W_enc tile
         + 2 * th * d_in * wb      # W_dec tile
         + 2 * d_in * 4            # centering-bias row (f32)
         + 2 * th * 4              # folded encoder-bias tile (f32)
         + 2 * tb * d_in * ob      # reconstruction output
         + 2 * tb * th * cb)       # sparse-code output
    if not acc_in_output:
        f += tb * d_in * 4         # f32 accumulator scratch
    return f


# --------------------------------------------------------------------------- #
# Kernels.  Grid = (batch tiles ["parallel"], hidden tiles ["arbitrary"]).
# --------------------------------------------------------------------------- #
def _sae_kernel_fused(x_ref, cb_ref, wenc_ref, benc_ref, wdec_ref,
                      recon_ref, code_ref):
    """recon is f32 and reduction-carried over the hidden axis: decoder
    partials accumulate directly into the VMEM-resident output block."""
    h = pl.program_id(1)

    @pl.when(h == 0)
    def _():
        # Start the accumulation from the centering bias (no epilogue add).
        recon_ref[...] = jnp.broadcast_to(cb_ref[...], recon_ref.shape)

    # Encoder tile: (tb, D_in) @ (D_in, th) on the MXU, f32 acc, + folded bias.
    pre = jnp.dot(x_ref[...], wenc_ref[...], preferred_element_type=jnp.float32)
    code = jnp.maximum(pre + benc_ref[...], 0.0)              # f32

    # Cast once to the MXU feed dtype; reuse for the code output when it matches.
    code_dec = code.astype(wdec_ref.dtype)
    if code_ref.dtype == wdec_ref.dtype:
        code_ref[...] = code_dec
    else:
        code_ref[...] = code.astype(code_ref.dtype)

    # Decoder partial: (tb, th) @ (th, D_in), accumulated in the f32 output block.
    recon_ref[...] += jnp.dot(code_dec, wdec_ref[...],
                              preferred_element_type=jnp.float32)


def _sae_kernel_scratch(x_ref, cb_ref, wenc_ref, benc_ref, wdec_ref,
                        recon_ref, code_ref, acc_ref):
    """Same as above, but the recon output dtype is not f32: accumulate in an
    f32 VMEM scratch and cast once on the last hidden step."""
    h = pl.program_id(1)

    @pl.when(h == 0)
    def _():
        acc_ref[...] = jnp.broadcast_to(cb_ref[...], acc_ref.shape)

    pre = jnp.dot(x_ref[...], wenc_ref[...], preferred_element_type=jnp.float32)
    code = jnp.maximum(pre + benc_ref[...], 0.0)

    code_dec = code.astype(wdec_ref.dtype)
    if code_ref.dtype == wdec_ref.dtype:
        code_ref[...] = code_dec
    else:
        code_ref[...] = code.astype(code_ref.dtype)

    acc_ref[...] += jnp.dot(code_dec, wdec_ref[...],
                            preferred_element_type=jnp.float32)

    @pl.when(h == pl.num_programs(1) - 1)
    def _():
        recon_ref[...] = acc_ref[...].astype(recon_ref.dtype)


# --------------------------------------------------------------------------- #
# Parameter preparation (one time, outside the hot path)
# --------------------------------------------------------------------------- #
class SAEParams(NamedTuple):
    cb: jax.Array       # (1, D_in)     f32 centering-bias row
    w_enc: jax.Array    # (D_in, padH)  compute dtype
    b_enc: jax.Array    # (1, padH)     f32 folded encoder bias (b - c @ W_enc)
    w_dec: jax.Array    # (padH, D_in)  compute dtype
    d_in: int
    d_hid: int
    tile_h: int
    compute_dtype: jnp.dtype
    code_dtype: jnp.dtype


def prepare_sae_params(centering_bias, w_enc, b_enc, w_dec, *,
                       compute_dtype=jnp.bfloat16, code_dtype=None,
                       tile_h=None, vmem_capacity=None):
    """One-time parameter preparation: fold the centering subtraction into the
    encoder bias, cast weights to the MXU feed dtype, pad D_hid to the hidden
    tile.  Hoisted out of the per-call forward (no repeated O(D_in*D_hid)
    cast/pad traffic)."""
    D_in, D_hid = w_enc.shape
    assert w_dec.shape == (D_hid, D_in)
    code_dtype = jnp.dtype(compute_dtype if code_dtype is None else code_dtype)
    compute_dtype = jnp.dtype(compute_dtype)
    f32 = jnp.float32

    if vmem_capacity is None:
        vmem_capacity = _tpu_vmem_capacity()
    budget = int(vmem_capacity * 0.85)

    # Hidden tile: default 512 (keep >= 512 for v5e's single vector-store slot);
    # shrink only if the double-buffered weight tiles alone would eat the budget.
    if tile_h is None:
        tile_h = 512
    th = _round_up(min(tile_h, _round_up(D_hid, 128)), 128)
    wb = compute_dtype.itemsize
    while th > 128 and 4 * D_in * th * wb > int(budget * 0.4):
        th = max(128, th // 2)

    padH = _round_up(D_hid, th)

    # Fold centering into the encoder bias: relu((x-c)W + b) == relu(xW + (b - cW)).
    b_fold = b_enc.astype(f32) - centering_bias.astype(f32) @ w_enc.astype(f32)

    wec = w_enc.astype(compute_dtype)
    wdc = w_dec.astype(compute_dtype)
    be2 = b_fold.reshape(1, D_hid)
    if padH != D_hid:
        # Zero pads are inert: relu(x @ 0 + 0) = 0 and zero decoder rows add nothing.
        wec = jnp.pad(wec, ((0, 0), (0, padH - D_hid)))
        be2 = jnp.pad(be2, ((0, 0), (0, padH - D_hid)))
        wdc = jnp.pad(wdc, ((0, padH - D_hid), (0, 0)))
    cb2 = centering_bias.astype(f32).reshape(1, D_in)

    return SAEParams(cb=cb2, w_enc=wec, b_enc=be2, w_dec=wdc,
                     d_in=D_in, d_hid=D_hid, tile_h=th,
                     compute_dtype=compute_dtype, code_dtype=code_dtype)


# --------------------------------------------------------------------------- #
# Forward (hot path)
# --------------------------------------------------------------------------- #
def sae_forward(params: SAEParams, x, *, tile_b=None, vmem_capacity=None):
    """x: [B, D_in].  Returns (reconstruction [B, D_in] in x.dtype,
    sparse_code [B, D_hid] in params.code_dtype)."""
    B, D_in = x.shape
    assert D_in == params.d_in
    out_dtype = jnp.dtype(x.dtype)
    compute_dtype = params.compute_dtype
    code_dtype = params.code_dtype
    th = params.tile_h
    padH = params.w_enc.shape[1]
    # f32 recon -> accumulate straight into the reduction-carried output block.
    acc_in_output = out_dtype == jnp.dtype(jnp.float32)

    if vmem_capacity is None:
        vmem_capacity = _tpu_vmem_capacity()
    budget = int(vmem_capacity * 0.85)

    # ---- Batch tile: per-generation target, megacore split, VMEM-aware shrink.
    sub = _sublane(compute_dtype, out_dtype, code_dtype)
    if tile_b is None:
        # Big batch tile amortizes the per-batch-tile weight stream (arithmetic
        # intensity ~ tile_b FLOP/byte): 1024 on 128 MiB parts (v5e/v6e),
        # 512 on 64 MiB parts (v7x).
        tile_b = 1024 if vmem_capacity >= (100 << 20) else 512
    tb = min(_round_up(tile_b, sub), _round_up(B, sub))
    # Guarantee >= 2 tiles on the "parallel" batch axis so both v7x TensorCores
    # get work (harmless on single-core chips).
    if B > sub and _round_up(B, tb) // tb < 2:
        tb = _round_up(-(-B // 2), sub)
    # Shrink until the double-buffered footprint fits the per-core VMEM budget.
    while tb > sub and _vmem_footprint(tb, th, D_in, compute_dtype, out_dtype,
                                       code_dtype, acc_in_output) > budget:
        tb = max(sub, _round_up(tb // 2, sub))

    padB = _round_up(B, tb)
    grid = (padB // tb, padH // th)

    # ---- Per-call input prep (cheap: only x is cast / padded). ----
    xc = x.astype(compute_dtype)
    if padB != B:
        xc = jnp.pad(xc, ((0, padB - B), (0, 0)))

    fp = _vmem_footprint(tb, th, D_in, compute_dtype, out_dtype, code_dtype,
                         acc_in_output)
    vmem_limit = int(min(max(int(fp * 1.3), 32 * 1024 * 1024),
                         int(vmem_capacity * 0.9)))

    wb = compute_dtype.itemsize
    n_btiles = padB // tb
    cost = pl.CostEstimate(
        flops=4 * padB * D_in * padH,            # two matmuls, 2*M*N*K each
        transcendentals=0,
        bytes_accessed=int(
            xc.size * xc.dtype.itemsize
            + n_btiles * (params.w_enc.size + params.w_dec.size) * wb
            + (params.cb.size + params.b_enc.size) * 4
            + padB * D_in * out_dtype.itemsize
            + padB * padH * code_dtype.itemsize),
    )

    kernel = _sae_kernel_fused if acc_in_output else _sae_kernel_scratch
    scratch = () if acc_in_output else (pltpu.VMEM((tb, D_in), jnp.float32),)

    recon, code = pl.pallas_call(
        kernel,
        out_shape=(
            jax.ShapeDtypeStruct((padB, D_in), out_dtype),
            jax.ShapeDtypeStruct((padB, padH), code_dtype),
        ),
        grid_spec=pltpu.PrefetchScalarGridSpec(
            num_scalar_prefetch=0,
            grid=grid,
            in_specs=[
                pl.BlockSpec((tb, D_in), lambda i, h: (i, 0)),   # x tile
                pl.BlockSpec((1, D_in), lambda i, h: (0, 0)),    # centering bias (f32)
                pl.BlockSpec((D_in, th), lambda i, h: (0, h)),   # encoder weight tile
                pl.BlockSpec((1, th), lambda i, h: (0, h)),      # folded encoder bias
                pl.BlockSpec((th, D_in), lambda i, h: (h, 0)),   # decoder weight tile
            ],
            out_specs=[
                pl.BlockSpec((tb, D_in), lambda i, h: (i, 0)),   # recon (carried over h)
                pl.BlockSpec((tb, th), lambda i, h: (i, h)),     # sparse code
            ],
            scratch_shapes=scratch,
        ),
        compiler_params=pltpu.CompilerParams(
            dimension_semantics=("parallel", "arbitrary"),
            vmem_limit_bytes=vmem_limit,
        ),
        cost_estimate=cost,
    )(xc, params.cb, params.w_enc, params.b_enc, params.w_dec)

    return recon[:B], code[:B, :params.d_hid]


def sparse_autoencoder_forward(x, centering_bias, w_enc, b_enc, w_dec, *,
                               tile_b=None, tile_h=None,
                               compute_dtype=jnp.bfloat16, code_dtype=None):
    """One-shot convenience wrapper.  For repeated calls, hoist
    prepare_sae_params() out of the hot path and call sae_forward()."""
    params = prepare_sae_params(centering_bias, w_enc, b_enc, w_dec,
                                compute_dtype=compute_dtype,
                                code_dtype=code_dtype, tile_h=tile_h)
    return sae_forward(params, x, tile_b=tile_b)


# --------------------------------------------------------------------------- #
# Deterministic init mirroring SparseAutoencoder._init_weights (synthetic)
# --------------------------------------------------------------------------- #
def init_params(key, input_dim, hidden_dim, dtype=jnp.float32):
    k_enc, k_dec, k_c = jax.random.split(key, 3)

    # encoder.weight (PyTorch [hidden, input]), kaiming_normal_ relu: std = sqrt(2/fan_in)
    std_enc = (2.0 / input_dim) ** 0.5
    w_enc_pt = jax.random.normal(k_enc, (hidden_dim, input_dim), dtype) * std_enc
    b_enc = jnp.zeros((hidden_dim,), dtype)

    # decoder.weight (PyTorch [input, hidden]), kaiming_normal_ linear, unit-norm columns.
    std_dec = (1.0 / hidden_dim) ** 0.5
    w_dec_pt = jax.random.normal(k_dec, (input_dim, hidden_dim), dtype) * std_dec
    col_norm = jnp.sqrt(jnp.sum(w_dec_pt * w_dec_pt, axis=0, keepdims=True))
    w_dec_pt = w_dec_pt / jnp.maximum(col_norm, 1e-12)

    # Non-zero centering bias so the folded-bias path is actually exercised.
    centering_bias = jax.random.normal(k_c, (input_dim,), dtype) * 0.1

    # Kernel ("math") layout: x @ W_enc, code @ W_dec.
    w_enc = w_enc_pt.T   # [D_in, D_hid]
    w_dec = w_dec_pt.T   # [D_hid, D_in]
    return centering_bias, w_enc, b_enc, w_dec


if __name__ == "__main__":
    input_dim, hidden_dim, batch = 256, 384, 24   # exercises batch & hidden padding

    key = jax.random.PRNGKey(0)
    k_x, k_p = jax.random.split(key)
    x = jax.random.normal(k_x, (batch, input_dim), jnp.float32)
    centering_bias, w_enc, b_enc, w_dec = init_params(k_p, input_dim, hidden_dim)

    # Pure-JAX reference of the module forward (use_top_k=False).
    code_ref = jnp.maximum((x - centering_bias) @ w_enc + b_enc, 0.0)
    recon_ref = code_ref @ w_dec + centering_bias

    # --- f32 path (direct accumulation into the recon output block) ---
    p32 = prepare_sae_params(centering_bias, w_enc, b_enc, w_dec,
                             compute_dtype=jnp.float32, code_dtype=jnp.float32,
                             tile_h=256)                      # 2 hidden grid steps
    recon32, code32 = sae_forward(p32, x)
    jax.block_until_ready((recon32, code32))
    assert jnp.allclose(code32, code_ref, atol=2e-4, rtol=2e-4)
    assert jnp.allclose(recon32, recon_ref, atol=2e-4, rtol=2e-4)

    # --- bf16 compute path (default), f32 input -> f32 recon (fused kernel) ---
    p16 = prepare_sae_params(centering_bias, w_enc, b_enc, w_dec)  # bf16 compute/code
    recon16, code16 = sae_forward(p16, x)
    jax.block_until_ready((recon16, code16))

    xb = x.astype(jnp.bfloat16).astype(jnp.float32)
    web = w_enc.astype(jnp.bfloat16).astype(jnp.float32)
    wdb = w_dec.astype(jnp.bfloat16).astype(jnp.float32)
    bfold = b_enc - centering_bias @ w_enc
    code_bref = jnp.maximum(xb @ web + bfold, 0.0)
    recon_bref = code_bref.astype(jnp.bfloat16).astype(jnp.float32) @ wdb + centering_bias
    assert jnp.allclose(code16.astype(jnp.float32), code_bref, atol=2e-2, rtol=2e-2)
    assert jnp.allclose(recon16.astype(jnp.float32), recon_bref, atol=2e-2, rtol=2e-2)

    # --- bf16 input -> bf16 recon (exercises the f32-scratch accumulator path) ---
    recon16b, code16b = sae_forward(p16, x.astype(jnp.bfloat16))
    jax.block_until_ready((recon16b, code16b))
    assert recon16b.dtype == jnp.bfloat16
    assert jnp.allclose(recon16b.astype(jnp.float32), recon_bref, atol=3e-2, rtol=3e-2)
    assert jnp.allclose(code16b.astype(jnp.float32), code_bref, atol=2e-2, rtol=2e-2)

    print("KERNEL_OK")
</pallas_src>

<mosaic_0001>
module attributes {stable_mosaic.version = 11 : i64} {
  func.func @_sae_kernel_fused(%arg0: i32, %arg1: i32, %arg2: memref<16x256xf32, #tpu.memory_space<vmem>>, %arg3: memref<1x256xf32, #tpu.memory_space<vmem>>, %arg4: memref<256x256xf32, #tpu.memory_space<vmem>>, %arg5: memref<1x256xf32, #tpu.memory_space<vmem>>, %arg6: memref<256x256xf32, #tpu.memory_space<vmem>>, %arg7: memref<16x256xf32, #tpu.memory_space<vmem>>, %arg8: memref<16x256xf32, #tpu.memory_space<vmem>>) attributes {dimension_semantics = [#tpu.dimension_semantics<parallel>, #tpu.dimension_semantics<arbitrary>], iteration_bounds = array<i64: 2, 2>, scalar_prefetch = 0 : i64, scratch_operands = 0 : i64, tpu.core_type = #tpu.core_type<tc>, window_params = [{transform_indices = @transform_0, window_bounds = array<i64: 16, 256>}, {pipeline_mode = #tpu.pipeline_mode<synchronous>, transform_indices = @transform_1, window_bounds = array<i64: 1, 256>}, {transform_indices = @transform_2, window_bounds = array<i64: 256, 256>}, {transform_indices = @transform_3, window_bounds = array<i64: 1, 256>}, {transform_indices = @transform_4, window_bounds = array<i64: 256, 256>}, {transform_indices = @transform_5, window_bounds = array<i64: 16, 256>}, {transform_indices = @transform_6, window_bounds = array<i64: 16, 256>}]} {
    %c0_i32 = arith.constant 0 : i32
    %0 = arith.cmpi eq, %arg1, %c0_i32 : i32
    %1 = arith.extui %0 : i1 to i32
    %c0_i32_0 = arith.constant 0 : i32
    %2 = arith.cmpi ne, %1, %c0_i32_0 : i32
    scf.if %2 {
      %c0_16 = arith.constant 0 : index
      %c0_17 = arith.constant 0 : index
      %17 = vector.load %arg3[%c0_16, %c0_17] : memref<1x256xf32, #tpu.memory_space<vmem>>, vector<1x256xf32>
      %18 = vector.shape_cast %17 : vector<1x256xf32> to vector<1x256xf32>
      %19 = vector.broadcast %18 : vector<1x256xf32> to vector<16x256xf32>
      %c0_18 = arith.constant 0 : index
      %c0_19 = arith.constant 0 : index
      %20 = vector.load %arg7[%c0_18, %c0_19] : memref<16x256xf32, #tpu.memory_space<vmem>>, vector<16x256xf32>
      tpu.vector_store %arg7[%c0_18, %c0_19], %19 {strides = array<i32>} : memref<16x256xf32, #tpu.memory_space<vmem>>, vector<16x256xf32>,
    } else {
    }
    %c0 = arith.constant 0 : index
    %c0_1 = arith.constant 0 : index
    %3 = vector.load %arg2[%c0, %c0_1] : memref<16x256xf32, #tpu.memory_space<vmem>>, vector<16x256xf32>
    %c0_2 = arith.constant 0 : index
    %c0_3 = arith.constant 0 : index
    %4 = vector.load %arg4[%c0_2, %c0_3] : memref<256x256xf32, #tpu.memory_space<vmem>>, vector<256x256xf32>
    %cst = arith.constant dense<0.000000e+00> : vector<16x256xf32>
    %5 = tpu.matmul %3, %4, %cst {dimension_numbers = #tpu.dot_dimension_numbers<[1], [0], [0], [1], [0, 0, 1, 1], [], []>} : vector<16x256xf32>, vector<256x256xf32>, vector<16x256xf32> -> vector<16x256xf32>
    %c0_4 = arith.constant 0 : index
    %c0_5 = arith.constant 0 : index
    %6 = vector.load %arg5[%c0_4, %c0_5] : memref<1x256xf32, #tpu.memory_space<vmem>>, vector<1x256xf32>
    %7 = vector.broadcast %6 : vector<1x256xf32> to vector<16x256xf32>
    %8 = arith.addf %5, %7 : vector<16x256xf32>
    %cst_6 = arith.constant 0.000000e+00 : f32
    %9 = vector.broadcast %cst_6 : f32 to vector<16x256xf32>
    %10 = arith.maximumf %8, %9 : vector<16x256xf32>
    %c0_7 = arith.constant 0 : index
    %c0_8 = arith.constant 0 : index
    %11 = vector.load %arg8[%c0_7, %c0_8] : memref<16x256xf32, #tpu.memory_space<vmem>>, vector<16x256xf32>
    tpu.vector_store %arg8[%c0_7, %c0_8], %10 {strides = array<i32>} : memref<16x256xf32, #tpu.memory_space<vmem>>, vector<16x256xf32>,
    %c0_9 = arith.constant 0 : index
    %c0_10 = arith.constant 0 : index
    %12 = vector.load %arg7[%c0_9, %c0_10] : memref<16x256xf32, #tpu.memory_space<vmem>>, vector<16x256xf32>
    %c0_11 = arith.constant 0 : index
    %c0_12 = arith.constant 0 : index
    %13 = vector.load %arg6[%c0_11, %c0_12] : memref<256x256xf32, #tpu.memory_space<vmem>>, vector<256x256xf32>
    %cst_13 = arith.constant dense<0.000000e+00> : vector<16x256xf32>
    %14 = tpu.matmul %10, %13, %cst_13 {dimension_numbers = #tpu.dot_dimension_numbers<[1], [0], [0], [1], [0, 0, 1, 1], [], []>} : vector<16x256xf32>, vector<256x256xf32>, vector<16x256xf32> -> vector<16x256xf32>
    %15 = arith.addf %12, %14 : vector<16x256xf32>
    %c0_14 = arith.constant 0 : index
    %c0_15 = arith.constant 0 : index
    %16 = vector.load %arg7[%c0_14, %c0_15] : memref<16x256xf32, #tpu.memory_space<vmem>>, vector<16x256xf32>
    tpu.vector_store %arg7[%c0_14, %c0_15], %15 {strides = array<i32>} : memref<16x256xf32, #tpu.memory_space<vmem>>, vector<16x256xf32>,
    return
  }
  func.func @transform_0(%arg0: i32, %arg1: i32) -> (i32, i32) {
    %c0_i32 = arith.constant 0 : i32
    %c0_i32_0 = arith.constant 0 : i32
    return %arg0, %c0_i32 : i32, i32
  }
  func.func @transform_1(%arg0: i32, %arg1: i32) -> (i32, i32) {
    %c0_i32 = arith.constant 0 : i32
    %c0_i32_0 = arith.constant 0 : i32
    %c0_i32_1 = arith.constant 0 : i32
    return %c0_i32, %c0_i32_0 : i32, i32
  }
  func.func @transform_2(%arg0: i32, %arg1: i32) -> (i32, i32) {
    %c0_i32 = arith.constant 0 : i32
    %c0_i32_0 = arith.constant 0 : i32
    return %c0_i32, %arg1 : i32, i32
  }
  func.func @transform_3(%arg0: i32, %arg1: i32) -> (i32, i32) {
    %c0_i32 = arith.constant 0 : i32
    %c0_i32_0 = arith.constant 0 : i32
    return %c0_i32, %arg1 : i32, i32
  }
  func.func @transform_4(%arg0: i32, %arg1: i32) -> (i32, i32) {
    %c0_i32 = arith.constant 0 : i32
    %c0_i32_0 = arith.constant 0 : i32
    return %arg1, %c0_i32 : i32, i32
  }
  func.func @transform_5(%arg0: i32, %arg1: i32) -> (i32, i32) {
    %c0_i32 = arith.constant 0 : i32
    %c0_i32_0 = arith.constant 0 : i32
    return %arg0, %c0_i32 : i32, i32
  }
  func.func @transform_6(%arg0: i32, %arg1: i32) -> (i32, i32) {
    %c0_i32 = arith.constant 0 : i32
    return %arg0, %arg1 : i32, i32
  }
}

</mosaic_0001>

<llo_original>
// kernel: tpu_custom_call.1
$region0: #{tpu_custom_call.1}
  #allocation0 [shape = 'u32[]', space=smem, size = 0x4, offset = 0x4, fixed_abs, tag = 'smem constant byte address 0x4 - core index']
  #allocation1 [shape = 'u32[144,128]{1,0:T(1,128)}', space=vmem, size = 0x12000, scoped, tag = 'internal scratch']
  %s0 = inlined_call_operand.hbm [shape: f32[32,256], index: 0, kind: input, shape index: {}]
  %s1 = inlined_call_operand.vmem [shape: f32[1,256], index: 1, kind: input, shape index: {}]
  %s2 = inlined_call_operand.hbm [shape: f32[256,512], index: 2, kind: input, shape index: {}]
  %s3 = inlined_call_operand.vmem [shape: f32[1,512], index: 3, kind: input, shape index: {}]
  %s4 = inlined_call_operand.hbm [shape: f32[512,256], index: 4, kind: input, shape index: {}]
  %s5 = inlined_call_operand.hbm [shape: f32[32,256], index: 5, kind: output, shape index: {0}]
  %s6 = inlined_call_operand.hbm [shape: f32[32,512], index: 6, kind: output, shape index: {1}]
  %7 = xla_tuple %s5, %s6
  %s8 = sld [smem:[#allocation0]]
  $region77: #{tpu_custom_call.1} parent=0
    _
  %s10 = ssub.s32 1, %s8
  %s11 = scalar_select 0, %s10, %s8
  $region1: #{tpu_custom_call.1} parent=0
    #allocation2 [shape = 'u8[32768]{0}', space=vmem, size = 0x8000, scoped, tag = 'input window, operand 0']
    #allocation3 [shape = 's32[2]{0}', space=sflag, size = 0x8, scoped, tag = 'scoped memory for tpu_custom_call.1']
    #allocation4 [shape = 's32[2]{0}', space=sflag, size = 0x8, scoped, tag = 'scoped memory for tpu_custom_call.1']
    #allocation5 [shape = 'u8[524288]{0}', space=vmem, size = 0x80000, scoped, tag = 'input window, operand 2']
    #allocation6 [shape = 's32[2]{0}', space=sflag, size = 0x8, scoped, tag = 'scoped memory for tpu_custom_call.1']
    #allocation7 [shape = 'u8[524288]{0}', space=vmem, size = 0x80000, scoped, tag = 'input window, operand 4']
    #allocation8 [shape = 'u8[32768]{0}', space=vmem, size = 0x8000, scoped, tag = 'output window, operand 0']
    #allocation9 [shape = 'u8[32768]{0}', space=vmem, size = 0x8000, scoped, tag = 'output window, operand 1']
    #allocation10 [shape = 's32[2]{0}', space=sflag, size = 0x8, scoped, tag = 'scoped memory for tpu_custom_call.1']
    %12 = vsyncpa [#allocation3], 0
    %s13 = scalar_lea.sflag [#allocation3], 1
    %14 = vsyncpa %s13, 0
    %15 = vsyncpa [#allocation6], 0
    %s16 = scalar_lea.sflag [#allocation6], 1
    %17 = vsyncpa %s16, 0
    %18 = vsyncpa [#allocation4], 0
    %s19 = scalar_lea.sflag [#allocation4], 1
    %20 = vsyncpa %s19, 0
    %21 = vsyncpa [#allocation10], 0
    %s22 = scalar_lea.sflag [#allocation10], 1
    %23 = vsyncpa %s22, 0
    loop: start=0, step=1, limit=6
    $region2: #{tpu_custom_call.1} parent=1 // loop_pre_header
      _
    $region3: #{tpu_custom_call.1} parent=1 // loop_header
      %s25 = sphi 0, %s29
      %p26 = scmp.ge.s32.totalorder %s25, 6
      %s32 = sphi 0, %s44
      %s33 = sphi 0, %s40
      %s34 = sphi 0, %s32
      %s35 = sphi 0, %s33
      %s36 = sphi 0, %s34
      %s37 = sphi 0, %s35
      %s47 = sphi 0, %s49
      %s50 = sphi 0, %s47
      %s51 = sphi 0, %s50
      %s67 = sphi 0, %s51
      %s71 = sphi 0, %s71
      %s73 = sphi 0, %s71
      %s74 = sphi 0, %s73
      %s88 = sphi 0, %s74
      %s94 = sphi 0, %s96
      %s97 = sphi 0, %s94
      %s98 = sphi 0, %s97
      %s114 = sphi 0, %s98
      %s120 = sphi 0, %s122
      %s123 = sphi 0, %s120
      %s124 = sphi 0, %s123
      %s140 = sphi 0, %s124
      %s146 = sphi 0, %s148
      %s149 = sphi 0, %s146
      %s150 = sphi 0, %s149
      %s166 = sphi 0, %s150
      %s172 = sphi 0, %s174
      %s175 = sphi 0, %s172
      %s176 = sphi 0, %s175
      %s192 = sphi 0, %s176
      %s200 = sphi 0, %s202
      %s203 = sphi 0, %s200
      %s204 = sphi 0, %s203
      %s220 = sphi 0, %s204
    $region4: #{tpu_custom_call.1} parent=1 // loop_header_branch
      %28 = sbr.rel (%p26) target = $region8
    $region5: #{tpu_custom_call.1} parent=1 // loop_body
      %s30 = ssub.s32 %s25, 1
      %s31 = ssub.s32 %s25, 2
      %s38 = sadd.s32 1, %s33
      %p39 = scmp.ge.s32.totalorder %s38, 2
      %s40 = scalar_select %p39, 0, %s38
      %s41 = sadd.s32 1, %s32
      %s42 = scalar_select %p39, %s41, %s32
      %p43 = scmp.ge.s32.totalorder %s42, 2
      %s44 = scalar_select %p43, 0, %s42
      %s45 = ssub.s32 %s32, %s44
      %p46 = scmp.eq.s32.totalorder %s45, 0
      %s48 = sadd.s32 %s47, 1
      %s49 = scalar_select %p46, %s47, %s48
      %p52 = pneg %p46
      %p53 = scmp.eq.s32.totalorder %s25, 3
      %p54 = por %p52, %p53
      %p55 = scmp.ne.s32.totalorder %s47, %s50
      %p56 = scmp.eq.s32.totalorder %s25, 0
      %p57 = por %p55, %p56
      %p58 = scmp.ne.s32.totalorder %s47, %s50
      %p59 = scmp.eq.s32.totalorder %s30, 3
      %p60 = por %p58, %p59
      %p61 = scmp.ne.s32.totalorder %s50, %s51
      %p62 = scmp.eq.s32.totalorder %s30, 0
      %p63 = por %p61, %p62
      %p64 = scmp.ne.s32.totalorder %s50, %s51
      %p65 = scmp.eq.s32.totalorder %s31, 3
      %p66 = por %p64, %p65
      %p68 = scmp.ne.s32.totalorder %s51, %s67
      %p69 = scmp.eq.s32.totalorder %s31, 0
      %p70 = por %p68, %p69
      %s72 = sadd.s32 %s71, 1
      %p75 = scmp.eq.s32.totalorder %s25, 3
      %p76 = scmp.ne.s32.totalorder %s71, %s73
      %p77 = scmp.eq.s32.totalorder %s25, 0
      %p78 = por %p76, %p77
      %p79 = scmp.ne.s32.totalorder %s71, %s73
      %p80 = scmp.eq.s32.totalorder %s30, 3
      %p81 = por %p79, %p80
      %p82 = scmp.ne.s32.totalorder %s73, %s74
      %p83 = scmp.eq.s32.totalorder %s30, 0
      %p84 = por %p82, %p83
      %p85 = scmp.ne.s32.totalorder %s73, %s74
      %p86 = scmp.eq.s32.totalorder %s31, 3
      %p87 = por %p85, %p86
      %p89 = scmp.ne.s32.totalorder %s74, %s88
      %p90 = scmp.eq.s32.totalorder %s31, 0
      %p91 = por %p89, %p90
      %s92 = ssub.s32 %s33, %s40
      %p93 = scmp.eq.s32.totalorder %s92, 0
      %s95 = sadd.s32 %s94, 1
      %s96 = scalar_select %p93, %s94, %s95
      %p99 = pneg %p93
      %p100 = scmp.eq.s32.totalorder %s25, 3
      %p101 = por %p99, %p100
      %p102 = scmp.ne.s32.totalorder %s94, %s97
      %p103 = scmp.eq.s32.totalorder %s25, 0
      %p104 = por %p102, %p103
      %p105 = scmp.ne.s32.totalorder %s94, %s97
      %p106 = scmp.eq.s32.totalorder %s30, 3
      %p107 = por %p105, %p106
      %p108 = scmp.ne.s32.totalorder %s97, %s98
      %p109 = scmp.eq.s32.totalorder %s30, 0
      %p110 = por %p108, %p109
      %p111 = scmp.ne.s32.totalorder %s97, %s98
      %p112 = scmp.eq.s32.totalorder %s31, 3
      %p113 = por %p111, %p112
      %p115 = scmp.ne.s32.totalorder %s98, %s114
      %p116 = scmp.eq.s32.totalorder %s31, 0
      %p117 = por %p115, %p116
      %s118 = ssub.s32 %s33, %s40
      %p119 = scmp.eq.s32.totalorder %s118, 0
      %s121 = sadd.s32 %s120, 1
      %s122 = scalar_select %p119, %s120, %s121
      %p125 = pneg %p119
      %p126 = scmp.eq.s32.totalorder %s25, 3
      %p127 = por %p125, %p126
      %p128 = scmp.ne.s32.totalorder %s120, %s123
      %p129 = scmp.eq.s32.totalorder %s25, 0
      %p130 = por %p128, %p129
      %p131 = scmp.ne.s32.totalorder %s120, %s123
      %p132 = scmp.eq.s32.totalorder %s30, 3
      %p133 = por %p131, %p132
      %p134 = scmp.ne.s32.totalorder %s123, %s124
      %p135 = scmp.eq.s32.totalorder %s30, 0
      %p136 = por %p134, %p135
      %p137 = scmp.ne.s32.totalorder %s123, %s124
      %p138 = scmp.eq.s32.totalorder %s31, 3
      %p139 = por %p137, %p138
      %p141 = scmp.ne.s32.totalorder %s124, %s140
      %p142 = scmp.eq.s32.totalorder %s31, 0
      %p143 = por %p141, %p142
      %s144 = ssub.s32 %s33, %s40
      %p145 = scmp.eq.s32.totalorder %s144, 0
      %s147 = sadd.s32 %s146, 1
      %s148 = scalar_select %p145, %s146, %s147
      %p151 = pneg %p145
      %p152 = scmp.eq.s32.totalorder %s25, 3
      %p153 = por %p151, %p152
      %p154 = scmp.ne.s32.totalorder %s146, %s149
      %p155 = scmp.eq.s32.totalorder %s25, 0
      %p156 = por %p154, %p155
      %p157 = scmp.ne.s32.totalorder %s146, %s149
      %p158 = scmp.eq.s32.totalorder %s30, 3
      %p159 = por %p157, %p158
      %p160 = scmp.ne.s32.totalorder %s149, %s150
      %p161 = scmp.eq.s32.totalorder %s30, 0
      %p162 = por %p160, %p161
      %p163 = scmp.ne.s32.totalorder %s149, %s150
      %p164 = scmp.eq.s32.totalorder %s31, 3
      %p165 = por %p163, %p164
      %p167 = scmp.ne.s32.totalorder %s150, %s166
      %p168 = scmp.eq.s32.totalorder %s31, 0
      %p169 = por %p167, %p168
      %s170 = ssub.s32 %s32, %s44
      %p171 = scmp.eq.s32.totalorder %s170, 0
      %s173 = sadd.s32 %s172, 1
      %s174 = scalar_select %p171, %s172, %s173
      %p177 = pneg %p171
      %p178 = scmp.eq.s32.totalorder %s25, 3
      %p179 = por %p177, %p178
      %p180 = scmp.ne.s32.totalorder %s172, %s175
      %p181 = scmp.eq.s32.totalorder %s25, 0
      %p182 = por %p180, %p181
      %p183 = scmp.ne.s32.totalorder %s172, %s175
      %p184 = scmp.eq.s32.totalorder %s30, 3
      %p185 = por %p183, %p184
      %p186 = scmp.ne.s32.totalorder %s175, %s176
      %p187 = scmp.eq.s32.totalorder %s30, 0
      %p188 = por %p186, %p187
      %p189 = scmp.ne.s32.totalorder %s175, %s176
      %p190 = scmp.eq.s32.totalorder %s31, 3
      %p191 = por %p189, %p190
      %p193 = scmp.ne.s32.totalorder %s176, %s192
      %p194 = scmp.eq.s32.totalorder %s31, 0
      %p195 = por %p193, %p194
      %s196 = ssub.s32 %s32, %s44
      %s197 = ssub.s32 %s33, %s40
      %s198 = sor.u32 %s196, %s197
      %p199 = scmp.eq.s32.totalorder %s198, 0
      %s201 = sadd.s32 %s200, 1
      %s202 = scalar_select %p199, %s200, %s201
      %p205 = pneg %p199
      %p206 = scmp.eq.s32.totalorder %s25, 3
      %p207 = por %p205, %p206
      %p208 = scmp.ne.s32.totalorder %s200, %s203
      %p209 = scmp.eq.s32.totalorder %s25, 0
      %p210 = por %p208, %p209
      %p211 = scmp.ne.s32.totalorder %s200, %s203
      %p212 = scmp.eq.s32.totalorder %s30, 3
      %p213 = por %p211, %p212
      %p214 = scmp.ne.s32.totalorder %s203, %s204
      %p215 = scmp.eq.s32.totalorder %s30, 0
      %p216 = por %p214, %p215
      %p217 = scmp.ne.s32.totalorder %s203, %s204
      %p218 = scmp.eq.s32.totalorder %s31, 3
      %p219 = por %p217, %p218
      %p221 = scmp.ne.s32.totalorder %s204, %s220
      %p222 = scmp.eq.s32.totalorder %s31, 0
      %p223 = por %p221, %p222
      %p224 = scmp.le.s32.totalorder 1, %s25
      %p225 = scmp.lt.s32.totalorder %s25, 5
      %p226 = pnand %p224, %p225
      %p227 = pneg %p226
      // Predicated region
      $region9: #{tpu_custom_call.1} parent=5 // pred_check
        _
      $region10: #{tpu_custom_call.1} parent=5 // pred_check_branch
        %229 = sbr.rel (%p226) target = $region12
      $region11: #{tpu_custom_call.1} parent=5 // pred_region
        %s230 = ssub.s32 %s25, 1
        // Predicated region
        $region13: #{tpu_custom_call.1} parent=11 // pred_check
          %p231 = pneg %p84
        $region14: #{tpu_custom_call.1} parent=11 // pred_check_branch
          %233 = sbr.rel (%p231) target = $region16
        $region15: #{tpu_custom_call.1} parent=11 // pred_region
          _
        $region16: #{tpu_custom_call.1} parent=11 // pred_fallthru
          _
      $region12: #{tpu_custom_call.1} parent=5 // pred_fallthru
        _
      %p234 = scmp.lt.s32.totalorder %s25, 4
      // Predicated region
      $region17: #{tpu_custom_call.1} parent=5 // pred_check
        %p235 = pneg %p234
      $region18: #{tpu_custom_call.1} parent=5 // pred_check_branch
        %237 = sbr.rel (%p235) target = $region20
      $region19: #{tpu_custom_call.1} parent=5 // pred_region
        // Predicated region
        $region21: #{tpu_custom_call.1} parent=19 // pred_check
          %p238 = pneg %p57
        $region22: #{tpu_custom_call.1} parent=19 // pred_check_branch
          %240 = sbr.rel (%p238) target = $region24
        $region23: #{tpu_custom_call.1} parent=19 // pred_region
          %s241 = sand.u32 %s47, 1
          %s242 = scalar_lea.sflag [#allocation3], %s241
          %s243 = sand.u32 %s47, 1
          %s244 = smul.addr %s243, 32
          %s245 = scalar_lea.vmem [#allocation2], %s244
          %s246 = smul.u32 2, %s32
          %s248 = ssub.s32 512, 512
          %249 = vsyncadd %s242, %s248
          %s250 = smul.addr %s246, 2
          %s251 = smul.addr %s250, 128
          %s252 = scalar_lea.hbm %s0, %s251
          %s253 = sshll.u32 %s245, 4
          %s254 = int_to_ptr.vmem [resolvable:$true] %s253
          %259 = dma.hbm_to_vmem [thread:$0]  %s252, 512, %s254, %s242, 256, 256, 16
        $region24: #{tpu_custom_call.1} parent=19 // pred_fallthru
          _
        // Predicated region
        $region25: #{tpu_custom_call.1} parent=19 // pred_check
          %p260 = pneg %p104
        $region26: #{tpu_custom_call.1} parent=19 // pred_check_branch
          %262 = sbr.rel (%p260) target = $region28
        $region27: #{tpu_custom_call.1} parent=19 // pred_region
          %s263 = sand.u32 %s25, 1
          %s264 = scalar_lea.sflag [#allocation6], %s263
          %s265 = sand.u32 %s94, 1
          %s266 = smul.addr %s265, 512
          %s267 = scalar_lea.vmem [#allocation5], %s266
          %s268 = smul.u32 2, %s33
          %s270 = ssub.s32 8192, 8192
          %271 = vsyncadd %s264, %s270
          %s272 = smul.addr %s268, 128
          %s273 = scalar_lea.hbm %s2, %s272
          %s274 = sshll.u32 %s267, 4
          %s275 = int_to_ptr.vmem [resolvable:$true] %s274
          %280 = dma.hbm_to_vmem [thread:$0]  %s273, 8192, %s275, %s264, 512, 256, 16
        $region28: #{tpu_custom_call.1} parent=19 // pred_fallthru
          _
        // Predicated region
        $region29: #{tpu_custom_call.1} parent=19 // pred_check
          %p281 = pneg %p130
        $region30: #{tpu_custom_call.1} parent=19 // pred_check_branch
          %283 = sbr.rel (%p281) target = $region32
        $region31: #{tpu_custom_call.1} parent=19 // pred_region
          %s284 = smul.u32 2, %s33
          %p285 = scmp.lt.s32.totalorder %s284, 3
          %s286 = scalar_select %p285, %s284, 3
          %s287 = scalar_lea.vmem %s3, %s286
          %s288 = smul.u32 2, %s33
        $region32: #{tpu_custom_call.1} parent=19 // pred_fallthru
          _
        // Predicated region
        $region33: #{tpu_custom_call.1} parent=19 // pred_check
          %p289 = pneg %p156
        $region34: #{tpu_custom_call.1} parent=19 // pred_check_branch
          %291 = sbr.rel (%p289) target = $region36
        $region35: #{tpu_custom_call.1} parent=19 // pred_region
          %s292 = sand.u32 %s25, 1
          %s293 = scalar_lea.sflag [#allocation6], %s292
          %s294 = sand.u32 %s146, 1
          %s295 = smul.addr %s294, 512
          %s296 = scalar_lea.vmem [#allocation7], %s295
          %s297 = smul.u32 32, %s33
          %s299 = ssub.s32 8192, 8192
          %300 = vsyncadd %s293, %s299
          %s301 = smul.addr %s297, 2
          %s302 = smul.addr %s301, 128
          %s303 = scalar_lea.hbm %s4, %s302
          %s304 = sshll.u32 %s296, 4
          %s305 = int_to_ptr.vmem [resolvable:$true] %s304
          %310 = dma.hbm_to_vmem [thread:$0]  %s303, 8192, %s305, %s293, 256, 256, 16
        $region36: #{tpu_custom_call.1} parent=19 // pred_fallthru
          _
      $region20: #{tpu_custom_call.1} parent=5 // pred_fallthru
        _
      %p311 = scmp.le.s32.totalorder 1, %s25
      %p312 = scmp.lt.s32.totalorder %s25, 5
      %p313 = pnand %p311, %p312
      %p314 = pneg %p313
      // Predicated region
      $region37: #{tpu_custom_call.1} parent=5 // pred_check
        _
      $region38: #{tpu_custom_call.1} parent=5 // pred_check_branch
        %316 = sbr.rel (%p313) target = $region40
      $region39: #{tpu_custom_call.1} parent=5 // pred_region
        %s317 = ssub.s32 %s25, 1
        %s318 = sand.u32 %s50, 1
        %s319 = scalar_lea.sflag [#allocation3], %s318
        %s320 = sand.u32 %s50, 1
        %s321 = smul.addr %s320, 32
        %s322 = scalar_lea.vmem [#allocation2], %s321
        // Predicated region
        $region41: #{tpu_custom_call.1} parent=39 // pred_check
          %p323 = pneg %p63
        $region42: #{tpu_custom_call.1} parent=39 // pred_check_branch
          %325 = sbr.rel (%p323) target = $region44
        $region43: #{tpu_custom_call.1} parent=39 // pred_region
          %326 = dma.done %s319, 512
        $region44: #{tpu_custom_call.1} parent=39 // pred_fallthru
          _
        %s327 = sand.u32 %s30, 1
        %s328 = scalar_lea.sflag [#allocation6], %s327
        %s329 = sand.u32 %s97, 1
        %s330 = smul.addr %s329, 512
        %s331 = scalar_lea.vmem [#allocation5], %s330
        // Predicated region
        $region45: #{tpu_custom_call.1} parent=39 // pred_check
          %p332 = pneg %p110
        $region46: #{tpu_custom_call.1} parent=39 // pred_check_branch
          %334 = sbr.rel (%p332) target = $region48
        $region47: #{tpu_custom_call.1} parent=39 // pred_region
          %335 = dma.done %s328, 8192
        $region48: #{tpu_custom_call.1} parent=39 // pred_fallthru
          _
        %s336 = sand.u32 %s30, 1
        %s337 = scalar_lea.sflag [#allocation6], %s336
        %s338 = sand.u32 %s149, 1
        %s339 = smul.addr %s338, 512
        %s340 = scalar_lea.vmem [#allocation7], %s339
        // Predicated region
        $region49: #{tpu_custom_call.1} parent=39 // pred_check
          %p341 = pneg %p162
        $region50: #{tpu_custom_call.1} parent=39 // pred_check_branch
          %343 = sbr.rel (%p341) target = $region52
        $region51: #{tpu_custom_call.1} parent=39 // pred_region
          %344 = dma.done %s337, 8192
        $region52: #{tpu_custom_call.1} parent=39 // pred_fallthru
          _
        %s345 = sand.u32 %s50, 1
        %s346 = scalar_lea.sflag [#allocation3], %s345
        %s347 = sand.u32 %s50, 1
        %s348 = smul.addr %s347, 32
        %s349 = scalar_lea.vmem [#allocation2], %s348
        %p350 = pneg %p63
        %p351 = pneg %p60
        %p352 = pneg %p84
        %p353 = pneg %p81
        %s354 = sand.u32 %s30, 1
        %s355 = scalar_lea.sflag [#allocation6], %s354
        %s356 = sand.u32 %s97, 1
        %s357 = smul.addr %s356, 512
        %s358 = scalar_lea.vmem [#allocation5], %s357
        %p359 = pneg %p110
        %p360 = pneg %p107
        %s361 = smul.u32 2, %s35
        %p362 = scmp.lt.s32.totalorder %s361, 3
        %s363 = scalar_select %p362, %s361, 3
        %s364 = scalar_lea.vmem %s3, %s363
        %p365 = pneg %p136
        %p366 = pneg %p133
        %s367 = sand.u32 %s30, 1
        %s368 = scalar_lea.sflag [#allocation6], %s367
        %s369 = sand.u32 %s149, 1
        %s370 = smul.addr %s369, 512
        %s371 = scalar_lea.vmem [#allocation7], %s370
        %p372 = pneg %p162
        %p373 = pneg %p159
        %p374 = pneg %p188
        %p375 = pneg %p185
        %s376 = sand.u32 %s175, 1
        %s377 = scalar_lea.sflag [#allocation4], %s376
        %s378 = sand.u32 %s175, 1
        %s379 = smul.addr %s378, 32
        %s380 = scalar_lea.vmem [#allocation8], %s379
        %p381 = pneg %p216
        %p382 = pneg %p213
        %s383 = sand.u32 %s203, 1
        %s384 = scalar_lea.sflag [#allocation10], %s383
        %s385 = sand.u32 %s203, 1
        %s386 = smul.addr %s385, 32
        %s387 = scalar_lea.vmem [#allocation9], %s386
        %s388 = smul.u32 2, %s34
        %s389 = smul.u32 2, %s35
        %s390 = smul.u32 2, %s35
        %p391 = scmp.lt.s32.totalorder %s390, 3
        %s392 = scalar_select %p391, %s390, 3
        %s393 = scalar_lea.vmem %s3, %s392
        %s394 = smul.u32 2, %s35
        %s395 = smul.u32 32, %s35
        %s396 = smul.u32 2, %s34
        %s397 = smul.u32 2, %s34
        %s398 = smul.u32 2, %s35
        %p399 = scmp.eq.s32.totalorder %s35, 0
        // Predicated region
        $region53: #{tpu_custom_call.1} parent=39 // pred_check
          %p400 = pneg %p399
        $region54: #{tpu_custom_call.1} parent=39 // pred_check_branch
          %402 = sbr.rel (%p400) target = $region56
        $region55: #{tpu_custom_call.1} parent=39 // pred_region
          %v403 = vld [vmem:[%s1] sm:$0x3]
          %v405 = vlaneseq
          %v406 = vshrl.u32 %v405, 7
          %v407 = vsub.s32 0, %v406
          %v408 = vrot.slane %v403, %v407
          %v409 = vlaneseq
          %v410 = vshrl.u32 %v409, 7
          %v411 = vsub.s32 1, %v410
          %v412 = vrot.slane %v403, %v411
          %415 = vst [vmem:[%s380] sm:$0xff] %v408
          %416 = vst [vmem:[%s380 + $0x8] sm:$0xff] %v412
          %417 = vst [vmem:[%s380 + $0x10] sm:$0xff] %v408
          %418 = vst [vmem:[%s380 + $0x18] sm:$0xff] %v412
        $region56: #{tpu_custom_call.1} parent=39 // pred_fallthru
          _
        %v419 = vld [vmem:[%s322] sm:$0xff]
        %v420 = vld [vmem:[%s322 + $0x8] sm:$0xff]
        %v421 = vld [vmem:[%s322 + $0x10] sm:$0xff]
        %v422 = vld [vmem:[%s322 + $0x18] sm:$0xff]
        %v423 = vld [vmem:[%s331] sm:$0xff]
        %v424 = vld [vmem:[%s331 + $0x8] sm:$0xff]
        %v425 = vld [vmem:[%s331 + $0x10] sm:$0xff]
        %v426 = vld [vmem:[%s331 + $0x18] sm:$0xff]
        %v427 = vld [vmem:[%s331 + $0x20] sm:$0xff]
        %v428 = vld [vmem:[%s331 + $0x28] sm:$0xff]
        %v429 = vld [vmem:[%s331 + $0x30] sm:$0xff]
        %v430 = vld [vmem:[%s331 + $0x38] sm:$0xff]
        %v431 = vld [vmem:[%s331 + $0x40] sm:$0xff]
        %v432 = vld [vmem:[%s331 + $0x48] sm:$0xff]
        %v433 = vld [vmem:[%s331 + $0x50] sm:$0xff]
        %v434 = vld [vmem:[%s331 + $0x58] sm:$0xff]
        %v435 = vld [vmem:[%s331 + $0x60] sm:$0xff]
        %v436 = vld [vmem:[%s331 + $0x68] sm:$0xff]
        %v437 = vld [vmem:[%s331 + $0x70] sm:$0xff]
        %v438 = vld [vmem:[%s331 + $0x78] sm:$0xff]
        %v439 = vld [vmem:[%s331 + $0x80] sm:$0xff]
        %v440 = vld [vmem:[%s331 + $0x88] sm:$0xff]
        %v441 = vld [vmem:[%s331 + $0x90] sm:$0xff]
        %v442 = vld [vmem:[%s331 + $0x98] sm:$0xff]
        %v443 = vld [vmem:[%s331 + $0xa0] sm:$0xff]
        %v444 = vld [vmem:[%s331 + $0xa8] sm:$0xff]
        %v445 = vld [vmem:[%s331 + $0xb0] sm:$0xff]
        %v446 = vld [vmem:[%s331 + $0xb8] sm:$0xff]
        %v447 = vld [vmem:[%s331 + $0xc0] sm:$0xff]
        %v448 = vld [vmem:[%s331 + $0xc8] sm:$0xff]
        %v449 = vld [vmem:[%s331 + $0xd0] sm:$0xff]
        %v450 = vld [vmem:[%s331 + $0xd8] sm:$0xff]
        %v451 = vld [vmem:[%s331 + $0xe0] sm:$0xff]
        %v452 = vld [vmem:[%s331 + $0xe8] sm:$0xff]
        %v453 = vld [vmem:[%s331 + $0xf0] sm:$0xff]
        %v454 = vld [vmem:[%s331 + $0xf8] sm:$0xff]
        %v455 = vld [vmem:[%s331 + $0x100] sm:$0xff]
        %v456 = vld [vmem:[%s331 + $0x108] sm:$0xff]
        %v457 = vld [vmem:[%s331 + $0x110] sm:$0xff]
        %v458 = vld [vmem:[%s331 + $0x118] sm:$0xff]
        %v459 = vld [vmem:[%s331 + $0x120] sm:$0xff]
        %v460 = vld [vmem:[%s331 + $0x128] sm:$0xff]
        %v461 = vld [vmem:[%s331 + $0x130] sm:$0xff]
        %v462 = vld [vmem:[%s331 + $0x138] sm:$0xff]
        %v463 = vld [vmem:[%s331 + $0x140] sm:$0xff]
        %v464 = vld [vmem:[%s331 + $0x148] sm:$0xff]
        %v465 = vld [vmem:[%s331 + $0x150] sm:$0xff]
        %v466 = vld [vmem:[%s331 + $0x158] sm:$0xff]
        %v467 = vld [vmem:[%s331 + $0x160] sm:$0xff]
        %v468 = vld [vmem:[%s331 + $0x168] sm:$0xff]
        %v469 = vld [vmem:[%s331 + $0x170] sm:$0xff]
        %v470 = vld [vmem:[%s331 + $0x178] sm:$0xff]
        %v471 = vld [vmem:[%s331 + $0x180] sm:$0xff]
        %v472 = vld [vmem:[%s331 + $0x188] sm:$0xff]
        %v473 = vld [vmem:[%s331 + $0x190] sm:$0xff]
        %v474 = vld [vmem:[%s331 + $0x198] sm:$0xff]
        %v475 = vld [vmem:[%s331 + $0x1a0] sm:$0xff]
        %v476 = vld [vmem:[%s331 + $0x1a8] sm:$0xff]
        %v477 = vld [vmem:[%s331 + $0x1b0] sm:$0xff]
        %v478 = vld [vmem:[%s331 + $0x1b8] sm:$0xff]
        %v479 = vld [vmem:[%s331 + $0x1c0] sm:$0xff]
        %v480 = vld [vmem:[%s331 + $0x1c8] sm:$0xff]
        %v481 = vld [vmem:[%s331 + $0x1d0] sm:$0xff]
        %v482 = vld [vmem:[%s331 + $0x1d8] sm:$0xff]
        %v483 = vld [vmem:[%s331 + $0x1e0] sm:$0xff]
        %v484 = vld [vmem:[%s331 + $0x1e8] sm:$0xff]
        %v485 = vld [vmem:[%s331 + $0x1f0] sm:$0xff]
        %v486 = vld [vmem:[%s331 + $0x1f8] sm:$0xff]
        %v487 = vld [vmem:[%s393] sm:$0x3]
        %v489 = vlaneseq
        %v490 = vshrl.u32 %v489, 7
        %v491 = vsub.s32 0, %v490
        %v492 = vrot.slane %v487, %v491
        %v493 = vlaneseq
        %v494 = vshrl.u32 %v493, 7
        %v495 = vsub.s32 1, %v494
        %v496 = vrot.slane %v487, %v495
        %499 = vmatprep.subr.mxu0 %v424
        %500 = vmatpush1.msra.mxu0 %v423
        %501 = vmatprep.subr.mxu0 %v426
        %502 = vmatpush1.msra.mxu0 %v425
        %503 = vmatprep.subr.mxu0 %v428
        %504 = vmatpush1.msra.mxu0 %v427
        %505 = vmatprep.subr.mxu0 %v430
        %506 = vmatpush1.msra.mxu0 %v429
        %507 = vmatprep.subr.mxu0 %v432
        %508 = vmatpush1.msra.mxu0 %v431
        %509 = vmatprep.subr.mxu0 %v434
        %510 = vmatpush1.msra.mxu0 %v433
        %511 = vmatprep.subr.mxu0 %v436
        %512 = vmatpush1.msra.mxu0 %v435
        %513 = vmatprep.subr.mxu0 %v438
        %514 = vmatpush1.msra.mxu0 %v437
        %515 = vmatprep.subr.mxu0 %v440
        %516 = vmatpush1.msra.mxu0 %v439
        %517 = vmatprep.subr.mxu0 %v442
        %518 = vmatpush1.msra.mxu0 %v441
        %519 = vmatprep.subr.mxu0 %v444
        %520 = vmatpush1.msra.mxu0 %v443
        %521 = vmatprep.subr.mxu0 %v446
        %522 = vmatpush1.msra.mxu0 %v445
        %523 = vmatprep.subr.mxu0 %v448
        %524 = vmatpush1.msra.mxu0 %v447
        %525 = vmatprep.subr.mxu0 %v450
        %526 = vmatpush1.msra.mxu0 %v449
        %527 = vmatprep.subr.mxu0 %v452
        %528 = vmatpush1.msra.mxu0 %v451
        %529 = vmatprep.subr.mxu0 %v454
        %530 = vmatpush1.msra.mxu0 %v453
        %531 = vmatprep.subr.mxu0 %v456
        %532 = vmatpush1.msra.mxu0 %v455
        %533 = vmatprep.subr.mxu0 %v458
        %534 = vmatpush1.msra.mxu0 %v457
        %535 = vmatprep.subr.mxu0 %v460
        %536 = vmatpush1.msra.mxu0 %v459
        %537 = vmatprep.subr.mxu0 %v462
        %538 = vmatpush1.msra.mxu0 %v461
        %539 = vmatprep.subr.mxu0 %v464
        %540 = vmatpush1.msra.mxu0 %v463
        %541 = vmatprep.subr.mxu0 %v466
        %542 = vmatpush1.msra.mxu0 %v465
        %543 = vmatprep.subr.mxu0 %v468
        %544 = vmatpush1.msra.mxu0 %v467
        %545 = vmatprep.subr.mxu0 %v470
        %546 = vmatpush1.msra.mxu0 %v469
        %547 = vmatprep.subr.mxu0 %v472
        %548 = vmatpush1.msra.mxu0 %v471
        %549 = vmatprep.subr.mxu0 %v474
        %550 = vmatpush1.msra.mxu0 %v473
        %551 = vmatprep.subr.mxu0 %v476
        %552 = vmatpush1.msra.mxu0 %v475
        %553 = vmatprep.subr.mxu0 %v478
        %554 = vmatpush1.msra.mxu0 %v477
        %555 = vmatprep.subr.mxu0 %v480
        %556 = vmatpush1.msra.mxu0 %v479
        %557 = vmatprep.subr.mxu0 %v482
        %558 = vmatpush1.msra.mxu0 %v481
        %559 = vmatprep.subr.mxu0 %v484
        %560 = vmatpush1.msra.mxu0 %v483
        %561 = vmatprep.subr.mxu0 %v486
        %562 = vmatpush1.msra.mxu0 %v485
        %563 = vmatprep.mubr.f32.mxu0 %v420
        %564 = vmatmul.mubr.f32.gmra.mrb[0].mxu0 %v419
        %v565 = vpop.f32.mrb[0].mxu0
        %v566 = vadd.f32 %v492, %v565
        %v567 = vpop.f32.mrb[0].mxu0
        %v568 = vadd.f32 %v496, %v567
        %569 = vmatprep.mubr.f32.mxu0 %v422
        %570 = vmatmul.mubr.f32.gmra.mrb[0].mxu0 %v421
        %v571 = vpop.f32.mrb[0].mxu0
        %v572 = vadd.f32 %v492, %v571
        %v573 = vpop.f32.mrb[0].mxu0
        %v574 = vadd.f32 %v496, %v573
        %575 = vdwg.mxu0
        %v576 = vmax.f32 %v566, 0.0
        %v577 = vmax.f32 %v568, 0.0
        %v578 = vmax.f32 %v572, 0.0
        %v579 = vmax.f32 %v574, 0.0
        %580 = vst [vmem:[%s387] sm:$0xff] %v576
        %581 = vst [vmem:[%s387 + $0x8] sm:$0xff] %v577
        %582 = vst [vmem:[%s387 + $0x10] sm:$0xff] %v578
        %583 = vst [vmem:[%s387 + $0x18] sm:$0xff] %v579
        %v584 = vld [vmem:[%s380] sm:$0xff]
        %v585 = vld [vmem:[%s380 + $0x8] sm:$0xff]
        %v586 = vld [vmem:[%s380 + $0x10] sm:$0xff]
        %v587 = vld [vmem:[%s380 + $0x18] sm:$0xff]
        %v588 = vld [vmem:[%s340] sm:$0xff]
        %v589 = vld [vmem:[%s340 + $0x8] sm:$0xff]
        %v590 = vld [vmem:[%s340 + $0x10] sm:$0xff]
        %v591 = vld [vmem:[%s340 + $0x18] sm:$0xff]
        %v592 = vld [vmem:[%s340 + $0x20] sm:$0xff]
        %v593 = vld [vmem:[%s340 + $0x28] sm:$0xff]
        %v594 = vld [vmem:[%s340 + $0x30] sm:$0xff]
        %v595 = vld [vmem:[%s340 + $0x38] sm:$0xff]
        %v596 = vld [vmem:[%s340 + $0x40] sm:$0xff]
        %v597 = vld [vmem:[%s340 + $0x48] sm:$0xff]
        %v598 = vld [vmem:[%s340 + $0x50] sm:$0xff]
        %v599 = vld [vmem:[%s340 + $0x58] sm:$0xff]
        %v600 = vld [vmem:[%s340 + $0x60] sm:$0xff]
        %v601 = vld [vmem:[%s340 + $0x68] sm:$0xff]
        %v602 = vld [vmem:[%s340 + $0x70] sm:$0xff]
        %v603 = vld [vmem:[%s340 + $0x78] sm:$0xff]
        %v604 = vld [vmem:[%s340 + $0x80] sm:$0xff]
        %v605 = vld [vmem:[%s340 + $0x88] sm:$0xff]
        %v606 = vld [vmem:[%s340 + $0x90] sm:$0xff]
        %v607 = vld [vmem:[%s340 + $0x98] sm:$0xff]
        %v608 = vld [vmem:[%s340 + $0xa0] sm:$0xff]
        %v609 = vld [vmem:[%s340 + $0xa8] sm:$0xff]
        %v610 = vld [vmem:[%s340 + $0xb0] sm:$0xff]
        %v611 = vld [vmem:[%s340 + $0xb8] sm:$0xff]
        %v612 = vld [vmem:[%s340 + $0xc0] sm:$0xff]
        %v613 = vld [vmem:[%s340 + $0xc8] sm:$0xff]
        %v614 = vld [vmem:[%s340 + $0xd0] sm:$0xff]
        %v615 = vld [vmem:[%s340 + $0xd8] sm:$0xff]
        %v616 = vld [vmem:[%s340 + $0xe0] sm:$0xff]
        %v617 = vld [vmem:[%s340 + $0xe8] sm:$0xff]
        %v618 = vld [vmem:[%s340 + $0xf0] sm:$0xff]
        %v619 = vld [vmem:[%s340 + $0xf8] sm:$0xff]
        %v620 = vld [vmem:[%s340 + $0x100] sm:$0xff]
        %v621 = vld [vmem:[%s340 + $0x108] sm:$0xff]
        %v622 = vld [vmem:[%s340 + $0x110] sm:$0xff]
        %v623 = vld [vmem:[%s340 + $0x118] sm:$0xff]
        %v624 = vld [vmem:[%s340 + $0x120] sm:$0xff]
        %v625 = vld [vmem:[%s340 + $0x128] sm:$0xff]
        %v626 = vld [vmem:[%s340 + $0x130] sm:$0xff]
        %v627 = vld [vmem:[%s340 + $0x138] sm:$0xff]
        %v628 = vld [vmem:[%s340 + $0x140] sm:$0xff]
        %v629 = vld [vmem:[%s340 + $0x148] sm:$0xff]
        %v630 = vld [vmem:[%s340 + $0x150] sm:$0xff]
        %v631 = vld [vmem:[%s340 + $0x158] sm:$0xff]
        %v632 = vld [vmem:[%s340 + $0x160] sm:$0xff]
        %v633 = vld [vmem:[%s340 + $0x168] sm:$0xff]
        %v634 = vld [vmem:[%s340 + $0x170] sm:$0xff]
        %v635 = vld [vmem:[%s340 + $0x178] sm:$0xff]
        %v636 = vld [vmem:[%s340 + $0x180] sm:$0xff]
        %v637 = vld [vmem:[%s340 + $0x188] sm:$0xff]
        %v638 = vld [vmem:[%s340 + $0x190] sm:$0xff]
        %v639 = vld [vmem:[%s340 + $0x198] sm:$0xff]
        %v640 = vld [vmem:[%s340 + $0x1a0] sm:$0xff]
        %v641 = vld [vmem:[%s340 + $0x1a8] sm:$0xff]
        %v642 = vld [vmem:[%s340 + $0x1b0] sm:$0xff]
        %v643 = vld [vmem:[%s340 + $0x1b8] sm:$0xff]
        %v644 = vld [vmem:[%s340 + $0x1c0] sm:$0xff]
        %v645 = vld [vmem:[%s340 + $0x1c8] sm:$0xff]
        %v646 = vld [vmem:[%s340 + $0x1d0] sm:$0xff]
        %v647 = vld [vmem:[%s340 + $0x1d8] sm:$0xff]
        %v648 = vld [vmem:[%s340 + $0x1e0] sm:$0xff]
        %v649 = vld [vmem:[%s340 + $0x1e8] sm:$0xff]
        %v650 = vld [vmem:[%s340 + $0x1f0] sm:$0xff]
        %v651 = vld [vmem:[%s340 + $0x1f8] sm:$0xff]
        %652 = vmatprep.subr.mxu0 %v589
        %653 = vmatpush1.msra.mxu0 %v588
        %654 = vmatprep.subr.mxu0 %v591
        %655 = vmatpush1.msra.mxu0 %v590
        %656 = vmatprep.subr.mxu0 %v593
        %657 = vmatpush1.msra.mxu0 %v592
        %658 = vmatprep.subr.mxu0 %v595
        %659 = vmatpush1.msra.mxu0 %v594
        %660 = vmatprep.subr.mxu0 %v597
        %661 = vmatpush1.msra.mxu0 %v596
        %662 = vmatprep.subr.mxu0 %v599
        %663 = vmatpush1.msra.mxu0 %v598
        %664 = vmatprep.subr.mxu0 %v601
        %665 = vmatpush1.msra.mxu0 %v600
        %666 = vmatprep.subr.mxu0 %v603
        %667 = vmatpush1.msra.mxu0 %v602
        %668 = vmatprep.subr.mxu0 %v605
        %669 = vmatpush1.msra.mxu0 %v604
        %670 = vmatprep.subr.mxu0 %v607
        %671 = vmatpush1.msra.mxu0 %v606
        %672 = vmatprep.subr.mxu0 %v609
        %673 = vmatpush1.msra.mxu0 %v608
        %674 = vmatprep.subr.mxu0 %v611
        %675 = vmatpush1.msra.mxu0 %v610
        %676 = vmatprep.subr.mxu0 %v613
        %677 = vmatpush1.msra.mxu0 %v612
        %678 = vmatprep.subr.mxu0 %v615
        %679 = vmatpush1.msra.mxu0 %v614
        %680 = vmatprep.subr.mxu0 %v617
        %681 = vmatpush1.msra.mxu0 %v616
        %682 = vmatprep.subr.mxu0 %v619
        %683 = vmatpush1.msra.mxu0 %v618
        %684 = vmatprep.subr.mxu0 %v621
        %685 = vmatpush1.msra.mxu0 %v620
        %686 = vmatprep.subr.mxu0 %v623
        %687 = vmatpush1.msra.mxu0 %v622
        %688 = vmatprep.subr.mxu0 %v625
        %689 = vmatpush1.msra.mxu0 %v624
        %690 = vmatprep.subr.mxu0 %v627
        %691 = vmatpush1.msra.mxu0 %v626
        %692 = vmatprep.subr.mxu0 %v629
        %693 = vmatpush1.msra.mxu0 %v628
        %694 = vmatprep.subr.mxu0 %v631
        %695 = vmatpush1.msra.mxu0 %v630
        %696 = vmatprep.subr.mxu0 %v633
        %697 = vmatpush1.msra.mxu0 %v632
        %698 = vmatprep.subr.mxu0 %v635
        %699 = vmatpush1.msra.mxu0 %v634
        %700 = vmatprep.subr.mxu0 %v637
        %701 = vmatpush1.msra.mxu0 %v636
        %702 = vmatprep.subr.mxu0 %v639
        %703 = vmatpush1.msra.mxu0 %v638
        %704 = vmatprep.subr.mxu0 %v641
        %705 = vmatpush1.msra.mxu0 %v640
        %706 = vmatprep.subr.mxu0 %v643
        %707 = vmatpush1.msra.mxu0 %v642
        %708 = vmatprep.subr.mxu0 %v645
        %709 = vmatpush1.msra.mxu0 %v644
        %710 = vmatprep.subr.mxu0 %v647
        %711 = vmatpush1.msra.mxu0 %v646
        %712 = vmatprep.subr.mxu0 %v649
        %713 = vmatpush1.msra.mxu0 %v648
        %714 = vmatprep.subr.mxu0 %v651
        %715 = vmatpush1.msra.mxu0 %v650
        %716 = vmatprep.mubr.f32.mxu0 %v577
        %717 = vmatmul.mubr.f32.gmra.mrb[0].mxu0 %v576
        %v718 = vpop.f32.mrb[0].mxu0
        %v719 = vadd.f32 0.0, %v718
        %v720 = vpop.f32.mrb[0].mxu0
        %v721 = vadd.f32 0.0, %v720
        %722 = vmatprep.mubr.f32.mxu0 %v579
        %723 = vmatmul.mubr.f32.gmra.mrb[0].mxu0 %v578
        %v724 = vpop.f32.mrb[0].mxu0
        %v725 = vadd.f32 0.0, %v724
        %v726 = vpop.f32.mrb[0].mxu0
        %v727 = vadd.f32 0.0, %v726
        %728 = vdwg.mxu0
        %v729 = vadd.f32 %v584, %v719
        %v730 = vadd.f32 %v585, %v721
        %v731 = vadd.f32 %v586, %v725
        %v732 = vadd.f32 %v587, %v727
        %733 = vst [vmem:[%s380] sm:$0xff] %v729
        %734 = vst [vmem:[%s380 + $0x8] sm:$0xff] %v730
        %735 = vst [vmem:[%s380 + $0x10] sm:$0xff] %v731
        %736 = vst [vmem:[%s380 + $0x18] sm:$0xff] %v732
        %s737 = sand.u32 %s175, 1
        %s738 = scalar_lea.sflag [#allocation4], %s737
        %s739 = sand.u32 %s175, 1
        %s740 = smul.addr %s739, 32
        %s741 = scalar_lea.vmem [#allocation8], %s740
        %s742 = sand.u32 %s203, 1
        %s743 = scalar_lea.sflag [#allocation10], %s742
        %s744 = sand.u32 %s203, 1
        %s745 = smul.addr %s744, 32
        %s746 = scalar_lea.vmem [#allocation9], %s745
        // Predicated region
        $region57: #{tpu_custom_call.1} parent=39 // pred_check
          %p747 = pneg %p185
        $region58: #{tpu_custom_call.1} parent=39 // pred_check_branch
          %749 = sbr.rel (%p747) target = $region60
        $region59: #{tpu_custom_call.1} parent=39 // pred_region
          %s750 = smul.u32 2, %s34
          %s752 = ssub.s32 512, 512
          %753 = vsyncadd %s738, %s752
          %s754 = smul.addr %s750, 2
          %s755 = smul.addr %s754, 128
          %s756 = scalar_lea.hbm %s5, %s755
          %s757 = sshll.u32 %s741, 4
          %s758 = int_to_ptr.vmem [resolvable:$true] %s757
          %763 = dma.vmem_to_hbm [thread:$0]  %s758, 512, %s756, %s738, 256, 256, 16
        $region60: #{tpu_custom_call.1} parent=39 // pred_fallthru
          _
        // Predicated region
        $region61: #{tpu_custom_call.1} parent=39 // pred_check
          %p764 = pneg %p213
        $region62: #{tpu_custom_call.1} parent=39 // pred_check_branch
          %766 = sbr.rel (%p764) target = $region64
        $region63: #{tpu_custom_call.1} parent=39 // pred_region
          %s767 = smul.u32 2, %s34
          %s768 = smul.u32 2, %s35
          %s770 = ssub.s32 512, 512
          %771 = vsyncadd %s743, %s770
          %s772 = smul.addr %s767, 4
          %s773 = sadd.s32 %s768, %s772
          %s774 = smul.addr %s773, 128
          %s775 = scalar_lea.hbm %s6, %s774
          %s776 = sshll.u32 %s746, 4
          %s777 = int_to_ptr.vmem [resolvable:$true] %s776
          %782 = dma.vmem_to_hbm [thread:$0]  %s777, 512, %s775, %s743, 256, 512, 16
        $region64: #{tpu_custom_call.1} parent=39 // pred_fallthru
          _
      $region40: #{tpu_custom_call.1} parent=5 // pred_fallthru
        _
      %p783 = scmp.le.s32.totalorder 2, %s25
      // Predicated region
      $region65: #{tpu_custom_call.1} parent=5 // pred_check
        %p784 = pneg %p783
      $region66: #{tpu_custom_call.1} parent=5 // pred_check_branch
        %786 = sbr.rel (%p784) target = $region68
      $region67: #{tpu_custom_call.1} parent=5 // pred_region
        %s787 = ssub.s32 %s25, 2
        // Predicated region
        $region69: #{tpu_custom_call.1} parent=67 // pred_check
          %p788 = pneg %p191
        $region70: #{tpu_custom_call.1} parent=67 // pred_check_branch
          %790 = sbr.rel (%p788) target = $region72
        $region71: #{tpu_custom_call.1} parent=67 // pred_region
          %s791 = sand.u32 %s176, 1
          %s792 = scalar_lea.sflag [#allocation4], %s791
          %s793 = sand.u32 %s176, 1
          %s794 = smul.addr %s793, 32
          %s795 = scalar_lea.vmem [#allocation8], %s794
          %796 = dma.done %s792, 512
        $region72: #{tpu_custom_call.1} parent=67 // pred_fallthru
          _
        // Predicated region
        $region73: #{tpu_custom_call.1} parent=67 // pred_check
          %p797 = pneg %p219
        $region74: #{tpu_custom_call.1} parent=67 // pred_check_branch
          %799 = sbr.rel (%p797) target = $region76
        $region75: #{tpu_custom_call.1} parent=67 // pred_region
          %s800 = sand.u32 %s204, 1
          %s801 = scalar_lea.sflag [#allocation10], %s800
          %s802 = sand.u32 %s204, 1
          %s803 = smul.addr %s802, 32
          %s804 = scalar_lea.vmem [#allocation9], %s803
          %805 = dma.done %s801, 512
        $region76: #{tpu_custom_call.1} parent=67 // pred_fallthru
          _
      $region68: #{tpu_custom_call.1} parent=5 // pred_fallthru
        _
    $region6: #{tpu_custom_call.1} parent=1 // loop_footer
      %s29 = sadd.s32 1, %s25
    $region7: #{tpu_custom_call.1} parent=1 // loop_footer_branch
      %24 = sbr.rel target = $region3
    $region8: #{tpu_custom_call.1} parent=1 // loop_exit
      _
    %806 = vsyncpa [#allocation3], 1
    %s807 = scalar_lea.sflag [#allocation3], 1
    %808 = vsyncpa %s807, 1
    %809 = vsyncpa [#allocation6], 1
    %s810 = scalar_lea.sflag [#allocation6], 1
    %811 = vsyncpa %s810, 1
    %812 = vsyncpa [#allocation4], 1
    %s813 = scalar_lea.sflag [#allocation4], 1
    %814 = vsyncpa %s813, 1
    %815 = vsyncpa [#allocation10], 1
    %s816 = scalar_lea.sflag [#allocation10], 1
    %817 = vsyncpa %s816, 1

</llo_original>
